<compile_context>
chip_gen: v6e
topology: v6e:2x2x1
jax: 0.10.0
libtpu: 0.0.40
codegen_flags: <defaults>
</compile_context>

<pallas_src>
import jax
import jax.numpy as jnp
from jax.experimental import pallas as pl
from jax.experimental.pallas import tpu as pltpu

# Real SH constants for l = 0, 1 (same as svox2 / plenoxels eval_sh_bases)
_C0 = 0.28209479177387814
_C1 = 0.4886025119029199

_LANES = 128
_MAX_ROWS_PER_STEP = 1024  # 1024 rows * 128 lanes = 131072 points per grid step


def _round_up(a, m):
    return ((a + m - 1) // m) * m


def _sublane_multiple(*dtypes):
    # f32 -> 8 rows per (8,128) tile, bf16/f16 -> 16, int8/fp8 -> 32
    smallest = min(jnp.dtype(d).itemsize for d in dtypes)
    return 8 * max(1, 4 // smallest)


def _choose_rows_per_step(n_rows, tb_max, sub):
    """Rows (of 128 points) per grid step.

    Large (amortize ~0.35us/step overhead), a multiple of the sublane tiling,
    even step count when >1 step (balances v7x's two TensorCores), and padding
    waste bounded by one sublane tile per step (never a whole block)."""
    tb_max = max(sub, (tb_max // sub) * sub)
    steps = max(1, -(-n_rows // tb_max))
    if steps > 1 and steps % 2:
        steps += 1  # even number of parallel steps -> balanced TC split on v7x
    tb = _round_up(-(-n_rows // steps), sub)
    # tb == full array dim is always a legal block dim; otherwise tb is a
    # multiple of `sub` and the (possibly partial) last block is masked.
    return min(tb, n_rows)


def _ish_l1_kernel(xyz_ref, rough_ref, out_ref):
    # xyz_ref : (3, tb, 128)  rows of 128 points, channels x, y, z
    # rough_ref: (tb, 128)
    # out_ref : (3, tb, 128)  l=1 SH coefficients (m = -1, 0, +1)
    r = rough_ref[...].astype(jnp.float32)
    # A1(kappa) = exp(-1/kappa) with kappa = 1/(r + 1e-8)  ==  exp(-(r + 1e-8))
    a1 = jnp.exp(-(r + 1e-8))

    x = xyz_ref[0].astype(jnp.float32)
    y = xyz_ref[1].astype(jnp.float32)
    z = xyz_ref[2].astype(jnp.float32)

    out_ref[0] = ((-_C1) * (y * a1)).astype(out_ref.dtype)  # l=1, m=-1
    out_ref[1] = ((_C1) * (z * a1)).astype(out_ref.dtype)   # l=1, m= 0
    out_ref[2] = ((-_C1) * (x * a1)).astype(out_ref.dtype)  # l=1, m=+1


def _ish_l1_call(xyz_rows, rough_rows, out_dtype, rows_per_step=_MAX_ROWS_PER_STEP):
    """xyz_rows: (3, R, 128), rough_rows: (R, 128) -> (3, R, 128) l=1 coeffs."""
    n_rows = xyz_rows.shape[1]
    sub = _sublane_multiple(xyz_rows.dtype, rough_rows.dtype, out_dtype)
    tb = _choose_rows_per_step(n_rows, rows_per_step, sub)
    grid = (-(-n_rows // tb),)

    return pl.pallas_call(
        _ish_l1_kernel,
        out_shape=jax.ShapeDtypeStruct((3, n_rows, _LANES), out_dtype),
        grid=grid,
        in_specs=[
            pl.BlockSpec((3, tb, _LANES), lambda i: (0, i, 0)),
            pl.BlockSpec((tb, _LANES), lambda i: (i, 0)),
        ],
        out_specs=pl.BlockSpec((3, tb, _LANES), lambda i: (0, i, 0)),
        compiler_params=pltpu.CompilerParams(
            dimension_semantics=("parallel",)),
    )(xyz_rows, rough_rows)


def full_ish_scaled_channels_first(xyz_cf, rough_cf, max_degree=1,
                                   rows_per_step=_MAX_ROWS_PER_STEP):
    """Fast path (recommended): channels-first in and out, no transposes.

    xyz_cf: (3, N), rough_cf: (N,) or (1, N)  ->  (4, N) SH coefficients.
    When N % 128 == 0 the reshapes below are pure metadata (no copy)."""
    assert max_degree == 1, "only max_degree=1 implemented"
    n = xyz_cf.shape[1]
    out_dtype = jnp.result_type(xyz_cf.dtype, rough_cf.dtype)

    n_pad = _round_up(max(n, 1), _LANES)
    n_rows = n_pad // _LANES
    xyz_rows = jnp.pad(xyz_cf, ((0, 0), (0, n_pad - n))).reshape(3, n_rows, _LANES)
    rough_rows = jnp.pad(rough_cf.reshape(n), (0, n_pad - n)).reshape(n_rows, _LANES)

    sh1 = _ish_l1_call(xyz_rows, rough_rows, out_dtype, rows_per_step)
    sh1 = sh1.reshape(3, n_pad)[:, :n]
    c0 = jnp.full((1, n), _C0, out_dtype)  # l=0 band is constant (A0 = 1)
    return jnp.concatenate([c0, sh1], axis=0)


def full_ish_scaled(vecs, roughness, max_degree=1,
                    rows_per_step=_MAX_ROWS_PER_STEP):
    """Module-compatible path: vecs (N, 3), roughness (N, 1) -> (N, 4).

    The (N, C) row-major contract forces one layout copy on each side of the
    kernel; use `full_ish_scaled_channels_first` to avoid them entirely."""
    assert max_degree == 1, "only max_degree=1 implemented"
    # TODO(synk): SH bands l > 1 of eval_sh_bases_scaled not implemented.
    n = vecs.shape[0]
    out_dtype = jnp.result_type(vecs.dtype, roughness.dtype)

    n_pad = _round_up(max(n, 1), _LANES)
    n_rows = n_pad // _LANES

    # One fused pad+transpose+reshape copy per input (no channel concat).
    xyz_rows = jnp.pad(vecs, ((0, n_pad - n), (0, 0))).T.reshape(3, n_rows, _LANES)
    rough_rows = jnp.pad(roughness.reshape(n), (0, n_pad - n)).reshape(n_rows, _LANES)

    sh1 = _ish_l1_call(xyz_rows, rough_rows, out_dtype, rows_per_step)

    # Back to the PyTorch convention (N, 4); C0 is a broadcast constant fused
    # into this single output copy.
    sh1 = sh1.reshape(3, n_pad)[:, :n].T                      # (N, 3)
    c0 = jnp.full((n, 1), _C0, out_dtype)
    return jnp.concatenate([c0, sh1], axis=-1)


if __name__ == "__main__":
    key = jax.random.PRNGKey(0)
    k1, k2 = jax.random.split(key)

    N = 300  # deliberately not a multiple of 128 to exercise the masked tail
    v = jax.random.normal(k1, (N, 3), dtype=jnp.float32)
    v = v / jnp.linalg.norm(v, axis=-1, keepdims=True)          # unit directions
    rough = jax.nn.softplus(jax.random.normal(k2, (N, 1), jnp.float32))

    out = jax.block_until_ready(full_ish_scaled(v, rough, max_degree=1))

    # pure-JAX reference with the original module's formulation
    kappa = 1.0 / (rough + 1e-8)
    a1 = jnp.exp(-1.0 / kappa)
    ref = jnp.concatenate(
        [jnp.full((N, 1), _C0, jnp.float32),
         -_C1 * v[:, 1:2] * a1,
         _C1 * v[:, 2:3] * a1,
         -_C1 * v[:, 0:1] * a1], axis=-1)

    assert out.shape == (N, 4) and out.dtype == jnp.float32
    assert jnp.allclose(out, ref, atol=1e-5, rtol=1e-5)

    # channels-first fast path (no transposes) must agree as well
    out_cf = jax.block_until_ready(
        full_ish_scaled_channels_first(v.T, rough.reshape(N)))
    assert out_cf.shape == (4, N)
    assert jnp.allclose(out_cf.T, ref, atol=1e-5, rtol=1e-5)

    print("KERNEL_OK")
</pallas_src>

<mosaic_0001>
module attributes {stable_mosaic.version = 11 : i64} {
  func.func @_ish_l1_kernel(%arg0: i32, %arg1: memref<3x3x128xf32, #tpu.memory_space<vmem>>, %arg2: memref<3x128xf32, #tpu.memory_space<vmem>>, %arg3: memref<3x3x128xf32, #tpu.memory_space<vmem>>) attributes {dimension_semantics = [#tpu.dimension_semantics<parallel>], iteration_bounds = array<i64: 1>, scalar_prefetch = 0 : i64, scratch_operands = 0 : i64, tpu.core_type = #tpu.core_type<tc>, window_params = [{transform_indices = @transform_0, window_bounds = array<i64: 3, 3, 128>}, {transform_indices = @transform_1, window_bounds = array<i64: 3, 128>}, {transform_indices = @transform_2, window_bounds = array<i64: 3, 3, 128>}]} {
    %c0 = arith.constant 0 : index
    %c0_0 = arith.constant 0 : index
    %0 = vector.load %arg2[%c0, %c0_0] : memref<3x128xf32, #tpu.memory_space<vmem>>, vector<3x128xf32>
    %cst = arith.constant 9.99999993E-9 : f32
    %1 = vector.broadcast %cst : f32 to vector<3x128xf32>
    %2 = arith.addf %0, %1 : vector<3x128xf32>
    %cst_1 = arith.constant 0.000000e+00 : f32
    %3 = vector.broadcast %cst_1 : f32 to vector<3x128xf32>
    %4 = arith.subf %3, %2 : vector<3x128xf32>
    %5 = math.exp %4 : vector<3x128xf32>
    %c0_2 = arith.constant 0 : index
    %c0_3 = arith.constant 0 : index
    %c0_4 = arith.constant 0 : index
    %6 = vector.load %arg1[%c0_2, %c0_3, %c0_4] : memref<3x3x128xf32, #tpu.memory_space<vmem>>, vector<1x3x128xf32>
    %7 = vector.shape_cast %6 : vector<1x3x128xf32> to vector<3x128xf32>
    %c1 = arith.constant 1 : index
    %c0_5 = arith.constant 0 : index
    %c0_6 = arith.constant 0 : index
    %8 = vector.load %arg1[%c1, %c0_5, %c0_6] : memref<3x3x128xf32, #tpu.memory_space<vmem>>, vector<1x3x128xf32>
    %9 = vector.shape_cast %8 : vector<1x3x128xf32> to vector<3x128xf32>
    %c2 = arith.constant 2 : index
    %c0_7 = arith.constant 0 : index
    %c0_8 = arith.constant 0 : index
    %10 = vector.load %arg1[%c2, %c0_7, %c0_8] : memref<3x3x128xf32, #tpu.memory_space<vmem>>, vector<1x3x128xf32>
    %11 = vector.shape_cast %10 : vector<1x3x128xf32> to vector<3x128xf32>
    %12 = arith.mulf %9, %5 : vector<3x128xf32>
    %cst_9 = arith.constant -0.488602519 : f32
    %13 = vector.broadcast %cst_9 : f32 to vector<3x128xf32>
    %14 = arith.mulf %13, %12 : vector<3x128xf32>
    %c0_10 = arith.constant 0 : index
    %c0_11 = arith.constant 0 : index
    %c0_12 = arith.constant 0 : index
    %15 = vector.load %arg3[%c0_10, %c0_11, %c0_12] : memref<3x3x128xf32, #tpu.memory_space<vmem>>, vector<1x3x128xf32>
    %16 = vector.shape_cast %15 : vector<1x3x128xf32> to vector<3x128xf32>
    %17 = vector.shape_cast %14 : vector<3x128xf32> to vector<1x3x128xf32>
    tpu.vector_store %arg3[%c0_10, %c0_11, %c0_12], %17 {strides = array<i32>} : memref<3x3x128xf32, #tpu.memory_space<vmem>>, vector<1x3x128xf32>,
    %18 = arith.mulf %11, %5 : vector<3x128xf32>
    %cst_13 = arith.constant 0.488602519 : f32
    %19 = vector.broadcast %cst_13 : f32 to vector<3x128xf32>
    %20 = arith.mulf %19, %18 : vector<3x128xf32>
    %c1_14 = arith.constant 1 : index
    %c0_15 = arith.constant 0 : index
    %c0_16 = arith.constant 0 : index
    %21 = vector.load %arg3[%c1_14, %c0_15, %c0_16] : memref<3x3x128xf32, #tpu.memory_space<vmem>>, vector<1x3x128xf32>
    %22 = vector.shape_cast %21 : vector<1x3x128xf32> to vector<3x128xf32>
    %23 = vector.shape_cast %20 : vector<3x128xf32> to vector<1x3x128xf32>
    tpu.vector_store %arg3[%c1_14, %c0_15, %c0_16], %23 {strides = array<i32>} : memref<3x3x128xf32, #tpu.memory_space<vmem>>, vector<1x3x128xf32>,
    %24 = arith.mulf %7, %5 : vector<3x128xf32>
    %cst_17 = arith.constant -0.488602519 : f32
    %25 = vector.broadcast %cst_17 : f32 to vector<3x128xf32>
    %26 = arith.mulf %25, %24 : vector<3x128xf32>
    %c2_18 = arith.constant 2 : index
    %c0_19 = arith.constant 0 : index
    %c0_20 = arith.constant 0 : index
    %27 = vector.load %arg3[%c2_18, %c0_19, %c0_20] : memref<3x3x128xf32, #tpu.memory_space<vmem>>, vector<1x3x128xf32>
    %28 = vector.shape_cast %27 : vector<1x3x128xf32> to vector<3x128xf32>
    %29 = vector.shape_cast %26 : vector<3x128xf32> to vector<1x3x128xf32>
    tpu.vector_store %arg3[%c2_18, %c0_19, %c0_20], %29 {strides = array<i32>} : memref<3x3x128xf32, #tpu.memory_space<vmem>>, vector<1x3x128xf32>,
    return
  }
  func.func @transform_0(%arg0: i32) -> (i32, i32, i32) {
    %c0_i32 = arith.constant 0 : i32
    %c0_i32_0 = arith.constant 0 : i32
    %c0_i32_1 = arith.constant 0 : i32
    return %c0_i32, %arg0, %c0_i32_0 : i32, i32, i32
  }
  func.func @transform_1(%arg0: i32) -> (i32, i32) {
    %c0_i32 = arith.constant 0 : i32
    %c0_i32_0 = arith.constant 0 : i32
    return %arg0, %c0_i32 : i32, i32
  }
  func.func @transform_2(%arg0: i32) -> (i32, i32, i32) {
    %c0_i32 = arith.constant 0 : i32
    %c0_i32_0 = arith.constant 0 : i32
    %c0_i32_1 = arith.constant 0 : i32
    return %c0_i32, %arg0, %c0_i32_0 : i32, i32, i32
  }
}

</mosaic_0001>

<llo_original>
// kernel: tpu_custom_call.1
$region0: #{tpu_custom_call.1}
  #allocation0 [shape = 'u32[]', space=smem, size = 0x4, offset = 0x4, fixed_abs, tag = 'smem constant byte address 0x4 - core index']
  #allocation1 [shape = 'u32[144,128]{1,0:T(1,128)}', space=vmem, size = 0x12000, scoped, tag = 'internal scratch']
  %s0 = inlined_call_operand.hbm [shape: f32[3,3,128], index: 0, kind: input, shape index: {}]
  %s1 = inlined_call_operand.hbm [shape: f32[3,128], index: 1, kind: input, shape index: {}]
  %s2 = inlined_call_operand.hbm [shape: f32[3,3,128], index: 2, kind: output, shape index: {}]
  %s3 = sld [smem:[#allocation0]]
  $region26: #{tpu_custom_call.1} parent=0
    _
  %s5 = ssub.s32 1, %s3
  %s6 = scalar_select 0, %s5, %s3
  $region1: #{tpu_custom_call.1} parent=0
    #allocation2 [shape = 'u8[6144]{0}', space=vmem, size = 0x1800, scoped, tag = 'input window, operand 0, single buffered']
    #allocation3 [shape = 's32[1]{0}', space=sflag, size = 0x4, scoped, tag = 'scoped memory for tpu_custom_call.1']
    #allocation4 [shape = 's32[1]{0}', space=sflag, size = 0x4, scoped, tag = 'scoped memory for tpu_custom_call.1']
    #allocation5 [shape = 'u8[2048]{0}', space=vmem, size = 0x800, scoped, tag = 'input window, operand 1, single buffered']
    #allocation6 [shape = 's32[1]{0}', space=sflag, size = 0x4, scoped, tag = 'scoped memory for tpu_custom_call.1']
    #allocation7 [shape = 'u8[6144]{0}', space=vmem, size = 0x1800, scoped, tag = 'output window, operand 0, single buffered']
    %7 = vsyncpa [#allocation3], 0
    %8 = vsyncpa [#allocation6], 0
    %9 = vsyncpa [#allocation4], 0
    // Predicated region
    $region2: #{tpu_custom_call.1} parent=1 // pred_check
      _
    $region3: #{tpu_custom_call.1} parent=1 // pred_check_branch
      %11 = sbr.rel (0) target = $region5
    $region4: #{tpu_custom_call.1} parent=1 // pred_region
      %s13 = ssub.s32 192, 192
      %14 = vsyncadd [#allocation3], %s13
      %s15 = sshll.u32 [#allocation2], 4
      %s16 = int_to_ptr.vmem [resolvable:$true] %s15
      %21 = dma.hbm_to_vmem [thread:$0]  %s0, 192, %s16, [#allocation3], 64, 64, 4
    $region5: #{tpu_custom_call.1} parent=1 // pred_fallthru
      _
    // Predicated region
    $region6: #{tpu_custom_call.1} parent=1 // pred_check
      _
    $region7: #{tpu_custom_call.1} parent=1 // pred_check_branch
      %23 = sbr.rel (0) target = $region9
    $region8: #{tpu_custom_call.1} parent=1 // pred_region
      %s25 = ssub.s32 64, 64
      %26 = vsyncadd [#allocation6], %s25
      %s28 = sshll.u32 [#allocation5], 4
      %s29 = int_to_ptr.vmem [resolvable:$true] %s28
      %31 = dma.hbm_to_vmem [thread:$0]  %s1, 64, %s29, [#allocation6]
    $region9: #{tpu_custom_call.1} parent=1 // pred_fallthru
      _
    // Predicated region
    $region10: #{tpu_custom_call.1} parent=1 // pred_check
      _
    $region11: #{tpu_custom_call.1} parent=1 // pred_check_branch
      %33 = sbr.rel (0) target = $region13
    $region12: #{tpu_custom_call.1} parent=1 // pred_region
      %34 = dma.done [#allocation3], 192
    $region13: #{tpu_custom_call.1} parent=1 // pred_fallthru
      _
    // Predicated region
    $region14: #{tpu_custom_call.1} parent=1 // pred_check
      _
    $region15: #{tpu_custom_call.1} parent=1 // pred_check_branch
      %36 = sbr.rel (0) target = $region17
    $region16: #{tpu_custom_call.1} parent=1 // pred_region
      %37 = dma.done [#allocation6], 64
    $region17: #{tpu_custom_call.1} parent=1 // pred_fallthru
      _
    %v38 = vld [vmem:[#allocation5] sm:$0x7]
    %v39 = vadd.f32 %v38, 1e-08
    %v40 = vsub.f32 0.0, %v39
    %v41 = vmul.f32 %v40, 1.442695
    %v42 = vpow.pop %v41
    %v43 = vld [vmem:[#allocation2] sm:$0x7]
    %s44 = scalar_lea.vmem [#allocation2], 4
    %v45 = vld [vmem:[%s44] sm:$0x7]
    %s46 = scalar_lea.vmem [#allocation2], 8
    %v47 = vld [vmem:[%s46] sm:$0x7]
    %v48 = vmul.f32 %v45, %v42
    %v49 = vmul.f32 %v48, -0.48860252
    %50 = vst [vmem:[#allocation7] sm:$0x7] %v49
    %v51 = vmul.f32 %v47, %v42
    %v52 = vmul.f32 %v51, 0.48860252
    %s53 = scalar_lea.vmem [#allocation7], 4
    %54 = vst [vmem:[%s53] sm:$0x7] %v52
    %v55 = vmul.f32 %v43, %v42
    %v56 = vmul.f32 %v55, -0.48860252
    %s57 = scalar_lea.vmem [#allocation7], 8
    %58 = vst [vmem:[%s57] sm:$0x7] %v56
    // Predicated region
    $region18: #{tpu_custom_call.1} parent=1 // pred_check
      _
    $region19: #{tpu_custom_call.1} parent=1 // pred_check_branch
      %60 = sbr.rel (0) target = $region21
    $region20: #{tpu_custom_call.1} parent=1 // pred_region
      %s62 = ssub.s32 192, 192
      %63 = vsyncadd [#allocation4], %s62
      %s64 = sshll.u32 [#allocation7], 4
      %s65 = int_to_ptr.vmem [resolvable:$true] %s64
      %70 = dma.vmem_to_hbm [thread:$0]  %s65, 192, %s2, [#allocation4], 64, 64, 4
    $region21: #{tpu_custom_call.1} parent=1 // pred_fallthru
      _
    // Predicated region
    $region22: #{tpu_custom_call.1} parent=1 // pred_check
      _
    $region23: #{tpu_custom_call.1} parent=1 // pred_check_branch
      %72 = sbr.rel (0) target = $region25
    $region24: #{tpu_custom_call.1} parent=1 // pred_region
      %73 = dma.done [#allocation4], 192
    $region25: #{tpu_custom_call.1} parent=1 // pred_fallthru
      _
    %74 = vsyncpa [#allocation3], 1
    %75 = vsyncpa [#allocation6], 1
    %76 = vsyncpa [#allocation4], 1

</llo_original>
